<compile_context>
chip_gen: v5e
topology: v5e:2x2
jax: 0.10.0
libtpu: 0.0.40
codegen_flags: <defaults>
</compile_context>

<pallas_src>
import functools

import jax
import jax.numpy as jnp
from jax import lax
from jax.experimental import pallas as pl
from jax.experimental.pallas import tpu as pltpu


def _normalize_kernel(x_ref, o_ref):
    """Row-wise L2 normalization of one (block, D) tile (F.normalize semantics)."""
    x = x_ref[...].astype(jnp.float32)
    sq = jnp.sum(x * x, axis=1, keepdims=True)
    o_ref[...] = x * lax.rsqrt(jnp.maximum(sq, 1e-24))


def _loss_kernel(lhs_ref, rhs_ref, pos_ref, o_ref, denom_ref, *,
                 inv_temp, inv_n, matmul_dtype):
    """One (block x block) tile of the 2B x 2B similarity problem.

    Grid = (row_tile i, col_tile j); j is the reduction axis.
      lhs_ref   : (block, D) normalized rows i*block .. (row tile)
      rhs_ref   : (block, D) normalized rows j*block .. (col tile)
      pos_ref   : (block, D) normalized partner rows ((row + B) mod 2B)
      o_ref     : (1, 1) scalar loss accumulator (resident across the grid)
      denom_ref : (block, 1) VMEM accumulator of sum_c exp(sim[r, c] / T)
    """
    i = pl.program_id(0)
    j = pl.program_id(1)
    last_j = pl.num_programs(1) - 1

    @pl.when(jnp.logical_and(i == 0, j == 0))
    def _init_out():
        o_ref[...] = jnp.zeros_like(o_ref)

    @pl.when(j == 0)
    def _init_denom():
        denom_ref[...] = jnp.zeros_like(denom_ref)

    # Fold 1/temperature into one matmul operand (no n^2 divide later).
    lhs = lhs_ref[...] * inv_temp            # (block, D) f32
    rhs = rhs_ref[...]                       # (block, D) f32
    if matmul_dtype is None:
        a_op, b_op = lhs, rhs
    else:
        a_op, b_op = lhs.astype(matmul_dtype), rhs.astype(matmul_dtype)

    # s = sim / T for this tile  (MXU, f32 accumulation).
    s = lax.dot_general(a_op, b_op, (((1,), (1,)), ((), ())),
                        preferred_element_type=jnp.float32)      # (block, block)
    denom_ref[...] += jnp.sum(jnp.exp(s), axis=1, keepdims=True)

    # Diagonal tile only: remove the self-similarity term (reference excludes
    # the diagonal via ~eye mask).  Row-wise elementwise dot, O(block*D).
    @pl.when(i == j)
    def _drop_diag():
        self_sim = jnp.sum(lhs * rhs, axis=1, keepdims=True)     # sim[r, r] / T
        denom_ref[...] -= jnp.exp(self_sim)

    # Last column step: finalize this row tile.
    @pl.when(j == last_j)
    def _finalize():
        # positives / T : row-wise dot with the partner rows (z_i . z_j).
        pos = jnp.sum(lhs * pos_ref[...], axis=1, keepdims=True)  # (block, 1)
        losses = jnp.log(denom_ref[...]) - pos                    # -log(exp(pos/T)/denom)
        o_ref[...] += jnp.sum(losses, keepdims=True) * inv_n


def contrastive_loss(proj_1, proj_2, temperature=0.5, *, block=None, matmul_dtype=None):
    """Pallas implementation of ContrastiveLoss.forward. Returns a scalar loss."""
    b, d = proj_1.shape
    assert proj_2.shape == (b, d)
    assert b % 8 == 0, "batch size must be a multiple of 8"
    n = 2 * b

    # Tile size: must divide B (so a tile never straddles the z_i / z_j halves)
    # and be sublane-aligned; prefer 256 to feed the v6e/v7x MXU, 128 for v5e.
    if block is None:
        for cand in (512, 256, 128, 64, 32, 16, 8):
            if b % cand == 0:
                block = cand
                break
    assert b % block == 0 and block % 8 == 0
    num_tiles = n // block
    half = b // block

    # Concatenate once in the wrapper (HBM copy) -- no in-kernel concat.
    z = jnp.concatenate([proj_1, proj_2], axis=0).astype(jnp.float32)

    # Prologue: row-wise L2 normalization (once per row, tiled over 2B).
    z = pl.pallas_call(
        _normalize_kernel,
        out_shape=jax.ShapeDtypeStruct((n, d), jnp.float32),
        grid=(num_tiles,),
        in_specs=[pl.BlockSpec((block, d), lambda i: (i, 0))],
        out_specs=pl.BlockSpec((block, d), lambda i: (i, 0)),
        compiler_params=pltpu.CompilerParams(
            dimension_semantics=("parallel",),
            vmem_limit_bytes=64 * 1024 * 1024,
        ),
    )(z)

    # Main kernel: tiled sim matmul + online denominator + positives + loss.
    kernel = functools.partial(
        _loss_kernel,
        inv_temp=1.0 / float(temperature),
        inv_n=1.0 / float(n),
        matmul_dtype=matmul_dtype,
    )
    out = pl.pallas_call(
        kernel,
        out_shape=jax.ShapeDtypeStruct((1, 1), jnp.float32),
        grid=(num_tiles, num_tiles),
        in_specs=[
            pl.BlockSpec((block, d), lambda i, j: (i, 0)),                        # row tile
            pl.BlockSpec((block, d), lambda i, j: (j, 0)),                        # col tile
            pl.BlockSpec((block, d), lambda i, j: ((i + half) % num_tiles, 0)),   # partner tile
        ],
        out_specs=pl.BlockSpec((1, 1), lambda i, j: (0, 0)),
        scratch_shapes=[pltpu.VMEM((block, 1), jnp.float32)],
        compiler_params=pltpu.CompilerParams(
            # Output scalar is a single accumulator shared by all grid steps, so
            # both axes must be sequential ("arbitrary"); col axis is the reduction.
            dimension_semantics=("arbitrary", "arbitrary"),
            vmem_limit_bytes=64 * 1024 * 1024,
        ),
    )(z, z, z)
    return out[0, 0]


def _reference_loss(proj_1, proj_2, temperature=0.5):
    """Pure-JAX reference mirroring the PyTorch module exactly."""
    b = proj_1.shape[0]
    z_i = proj_1 / jnp.linalg.norm(proj_1, axis=1, keepdims=True)
    z_j = proj_2 / jnp.linalg.norm(proj_2, axis=1, keepdims=True)
    reps = jnp.concatenate([z_i, z_j], axis=0)
    sim = reps @ reps.T
    n = 2 * b
    sim_ij = jnp.diagonal(sim, offset=b)
    sim_ji = jnp.diagonal(sim, offset=-b)
    positives = jnp.concatenate([sim_ij, sim_ji], axis=0)
    nominator = jnp.exp(positives / temperature)
    mask = 1.0 - jnp.eye(n)
    denominator = jnp.sum(mask * jnp.exp(sim / temperature), axis=1)
    all_losses = -jnp.log(nominator / denominator)
    return jnp.sum(all_losses) / n


if __name__ == "__main__":
    key = jax.random.PRNGKey(0)

    # Case 1: small (B=8, D=128)  -> block=8, grid (2, 2).
    k1, k2, k3, k4 = jax.random.split(key, 4)
    p1 = jax.random.normal(k1, (8, 128), dtype=jnp.float32)
    p2 = jax.random.normal(k2, (8, 128), dtype=jnp.float32)
    loss = jax.block_until_ready(contrastive_loss(p1, p2, temperature=0.5))
    ref = jax.block_until_ready(_reference_loss(p1, p2, temperature=0.5))
    assert jnp.allclose(loss, ref, rtol=1e-4, atol=1e-4), (loss, ref)

    # Case 2: multi-tile reduction with partner wrap (B=24, D=128) -> block=8, grid (6, 6).
    q1 = jax.random.normal(k3, (24, 128), dtype=jnp.float32)
    q2 = jax.random.normal(k4, (24, 128), dtype=jnp.float32)
    loss2 = jax.block_until_ready(contrastive_loss(q1, q2, temperature=0.5))
    ref2 = jax.block_until_ready(_reference_loss(q1, q2, temperature=0.5))
    assert jnp.allclose(loss2, ref2, rtol=1e-4, atol=1e-4), (loss2, ref2)

    print("KERNEL_OK")
</pallas_src>

<mosaic_0001>
module attributes {stable_mosaic.version = 11 : i64} {
  func.func @_normalize_kernel(%arg0: i32, %arg1: memref<8x128xf32, #tpu.memory_space<vmem>>, %arg2: memref<8x128xf32, #tpu.memory_space<vmem>>) attributes {dimension_semantics = [#tpu.dimension_semantics<parallel>], iteration_bounds = array<i64: 2>, scalar_prefetch = 0 : i64, scratch_operands = 0 : i64, tpu.core_type = #tpu.core_type<tc>, window_params = [{transform_indices = @transform_0, window_bounds = array<i64: 8, 128>}, {transform_indices = @transform_1, window_bounds = array<i64: 8, 128>}]} {
    %c0 = arith.constant 0 : index
    %c0_0 = arith.constant 0 : index
    %0 = vector.load %arg1[%c0, %c0_0] : memref<8x128xf32, #tpu.memory_space<vmem>>, vector<8x128xf32>
    %1 = arith.mulf %0, %0 : vector<8x128xf32>
    %cst = arith.constant dense<0.000000e+00> : vector<8xf32>
    %2 = vector.multi_reduction <add>, %1, %cst [1] : vector<8x128xf32> to vector<8xf32>
    %3 = vector.shape_cast %2 : vector<8xf32> to vector<8x1xf32>
    %cst_1 = arith.constant 1.000000e-24 : f32
    %4 = vector.broadcast %cst_1 : f32 to vector<8x1xf32>
    %5 = arith.maximumf %3, %4 : vector<8x1xf32>
    %6 = math.rsqrt %5 : vector<8x1xf32>
    %7 = vector.broadcast %6 : vector<8x1xf32> to vector<8x128xf32>
    %8 = arith.mulf %0, %7 : vector<8x128xf32>
    %c0_2 = arith.constant 0 : index
    %c0_3 = arith.constant 0 : index
    %9 = vector.load %arg2[%c0_2, %c0_3] : memref<8x128xf32, #tpu.memory_space<vmem>>, vector<8x128xf32>
    tpu.vector_store %arg2[%c0_2, %c0_3], %8 {strides = array<i32>} : memref<8x128xf32, #tpu.memory_space<vmem>>, vector<8x128xf32>,
    return
  }
  func.func @transform_0(%arg0: i32) -> (i32, i32) {
    %c0_i32 = arith.constant 0 : i32
    %c0_i32_0 = arith.constant 0 : i32
    return %arg0, %c0_i32 : i32, i32
  }
  func.func @transform_1(%arg0: i32) -> (i32, i32) {
    %c0_i32 = arith.constant 0 : i32
    %c0_i32_0 = arith.constant 0 : i32
    return %arg0, %c0_i32 : i32, i32
  }
}

</mosaic_0001>

<llo_original>
// kernel: tpu_custom_call.1
$region0: #{tpu_custom_call.1}
  #allocation0 [shape = 'u32[]', space=smem, size = 0x4, offset = 0x4, fixed_abs, tag = 'smem constant byte address 0x4 - core index']
  #allocation1 [shape = 'u32[72,128]{1,0:T(1,128)}', space=vmem, size = 0x9000, scoped, tag = 'internal scratch']
  %s0 = inlined_call_operand.hbm [shape: f32[16,128], index: 0, kind: input, shape index: {}]
  %s1 = inlined_call_operand.hbm [shape: f32[16,128], index: 1, kind: output, shape index: {}]
  %s2 = sld [smem:[#allocation0]]
  $region41: #{tpu_custom_call.1} parent=0
    _
  %s4 = ssub.s32 1, %s2
  %s5 = scalar_select 0, %s4, %s2
  $region1: #{tpu_custom_call.1} parent=0
    #allocation2 [shape = 'u8[8192]{0}', space=vmem, size = 0x2000, scoped, tag = 'input window, operand 0']
    #allocation3 [shape = 's32[2]{0}', space=sflag, size = 0x8, scoped, tag = 'scoped memory for tpu_custom_call.1']
    #allocation4 [shape = 's32[2]{0}', space=sflag, size = 0x8, scoped, tag = 'scoped memory for tpu_custom_call.1']
    #allocation5 [shape = 'u8[8192]{0}', space=vmem, size = 0x2000, scoped, tag = 'output window, operand 0']
    %6 = vsyncpa [#allocation3], 0
    %s7 = scalar_lea.sflag [#allocation3], 1
    %8 = vsyncpa %s7, 0
    %9 = vsyncpa [#allocation4], 0
    %s10 = scalar_lea.sflag [#allocation4], 1
    %11 = vsyncpa %s10, 0
    loop: start=0, step=1, limit=4
    $region2: #{tpu_custom_call.1} parent=1 // loop_pre_header
      _
    $region3: #{tpu_custom_call.1} parent=1 // loop_header
      %s13 = sphi 0, %s17
      %p14 = scmp.ge.s32.totalorder %s13, 4
      %s23 = sphi 0, %s25
      %s26 = sphi 0, %s23
      %s27 = sphi 0, %s26
      %s43 = sphi 0, %s27
      %s49 = sphi 0, %s51
      %s52 = sphi 0, %s49
      %s53 = sphi 0, %s52
      %s69 = sphi 0, %s53
    $region4: #{tpu_custom_call.1} parent=1 // loop_header_branch
      %16 = sbr.rel (%p14) target = $region8
    $region5: #{tpu_custom_call.1} parent=1 // loop_body
      %s18 = ssub.s32 %s13, 1
      %s19 = ssub.s32 %s13, 2
      %s20 = sadd.s32 %s13, 1
      %s21 = ssub.s32 %s13, %s20
      %p22 = scmp.eq.s32.totalorder %s21, 0
      %s24 = sadd.s32 %s23, 1
      %s25 = scalar_select %p22, %s23, %s24
      %p28 = pneg %p22
      %p29 = scmp.eq.s32.totalorder %s13, 1
      %p30 = por %p28, %p29
      %p31 = scmp.ne.s32.totalorder %s23, %s26
      %p32 = scmp.eq.s32.totalorder %s13, 0
      %p33 = por %p31, %p32
      %p34 = scmp.ne.s32.totalorder %s23, %s26
      %p35 = scmp.eq.s32.totalorder %s18, 1
      %p36 = por %p34, %p35
      %p37 = scmp.ne.s32.totalorder %s26, %s27
      %p38 = scmp.eq.s32.totalorder %s18, 0
      %p39 = por %p37, %p38
      %p40 = scmp.ne.s32.totalorder %s26, %s27
      %p41 = scmp.eq.s32.totalorder %s19, 1
      %p42 = por %p40, %p41
      %p44 = scmp.ne.s32.totalorder %s27, %s43
      %p45 = scmp.eq.s32.totalorder %s19, 0
      %p46 = por %p44, %p45
      %s47 = ssub.s32 %s13, %s20
      %p48 = scmp.eq.s32.totalorder %s47, 0
      %s50 = sadd.s32 %s49, 1
      %s51 = scalar_select %p48, %s49, %s50
      %p54 = pneg %p48
      %p55 = scmp.eq.s32.totalorder %s13, 1
      %p56 = por %p54, %p55
      %p57 = scmp.ne.s32.totalorder %s49, %s52
      %p58 = scmp.eq.s32.totalorder %s13, 0
      %p59 = por %p57, %p58
      %p60 = scmp.ne.s32.totalorder %s49, %s52
      %p61 = scmp.eq.s32.totalorder %s18, 1
      %p62 = por %p60, %p61
      %p63 = scmp.ne.s32.totalorder %s52, %s53
      %p64 = scmp.eq.s32.totalorder %s18, 0
      %p65 = por %p63, %p64
      %p66 = scmp.ne.s32.totalorder %s52, %s53
      %p67 = scmp.eq.s32.totalorder %s19, 1
      %p68 = por %p66, %p67
      %p70 = scmp.ne.s32.totalorder %s53, %s69
      %p71 = scmp.eq.s32.totalorder %s19, 0
      %p72 = por %p70, %p71
      %p73 = scmp.le.s32.totalorder 1, %s13
      %p74 = scmp.lt.s32.totalorder %s13, 3
      %p75 = pnand %p73, %p74
      %p76 = pneg %p75
      // Predicated region
      $region9: #{tpu_custom_call.1} parent=5 // pred_check
        _
      $region10: #{tpu_custom_call.1} parent=5 // pred_check_branch
        %78 = sbr.rel (%p75) target = $region12
      $region11: #{tpu_custom_call.1} parent=5 // pred_region
        %s79 = ssub.s32 %s13, 1
      $region12: #{tpu_custom_call.1} parent=5 // pred_fallthru
        _
      %p80 = scmp.lt.s32.totalorder %s13, 2
      // Predicated region
      $region13: #{tpu_custom_call.1} parent=5 // pred_check
        %p81 = pneg %p80
      $region14: #{tpu_custom_call.1} parent=5 // pred_check_branch
        %83 = sbr.rel (%p81) target = $region16
      $region15: #{tpu_custom_call.1} parent=5 // pred_region
        // Predicated region
        $region17: #{tpu_custom_call.1} parent=15 // pred_check
          %p84 = pneg %p33
        $region18: #{tpu_custom_call.1} parent=15 // pred_check_branch
          %86 = sbr.rel (%p84) target = $region20
        $region19: #{tpu_custom_call.1} parent=15 // pred_region
          %s87 = sand.u32 %s23, 1
          %s88 = scalar_lea.sflag [#allocation3], %s87
          %s89 = sand.u32 %s23, 1
          %s90 = smul.addr %s89, 8
          %s91 = scalar_lea.vmem [#allocation2], %s90
          %93 = vsyncadd %s88, 0
          %s94 = smul.addr %s13, 8
          %s95 = scalar_lea.hbm %s0, %s94
          %s97 = sshll.u32 %s95, 4
          %s98 = int_to_ptr.hbm [resolvable:$true] %s97
          %s99 = sshll.u32 %s91, 4
          %s100 = int_to_ptr.vmem [resolvable:$true] %s99
          %102 = dma.hbm_to_vmem [thread:$0]  %s98, 128, %s100, %s88
        $region20: #{tpu_custom_call.1} parent=15 // pred_fallthru
          _
      $region16: #{tpu_custom_call.1} parent=5 // pred_fallthru
        _
      %p103 = scmp.le.s32.totalorder 1, %s13
      %p104 = scmp.lt.s32.totalorder %s13, 3
      %p105 = pnand %p103, %p104
      %p106 = pneg %p105
      // Predicated region
      $region21: #{tpu_custom_call.1} parent=5 // pred_check
        _
      $region22: #{tpu_custom_call.1} parent=5 // pred_check_branch
        %108 = sbr.rel (%p105) target = $region24
      $region23: #{tpu_custom_call.1} parent=5 // pred_region
        %s109 = ssub.s32 %s13, 1
        %s110 = sand.u32 %s26, 1
        %s111 = scalar_lea.sflag [#allocation3], %s110
        %s112 = sand.u32 %s26, 1
        %s113 = smul.addr %s112, 8
        %s114 = scalar_lea.vmem [#allocation2], %s113
        // Predicated region
        $region25: #{tpu_custom_call.1} parent=23 // pred_check
          %p115 = pneg %p39
        $region26: #{tpu_custom_call.1} parent=23 // pred_check_branch
          %117 = sbr.rel (%p115) target = $region28
        $region27: #{tpu_custom_call.1} parent=23 // pred_region
          %119 = dma.done %s111, 128
        $region28: #{tpu_custom_call.1} parent=23 // pred_fallthru
          _
        %s120 = sand.u32 %s26, 1
        %s121 = scalar_lea.sflag [#allocation3], %s120
        %s122 = sand.u32 %s26, 1
        %s123 = smul.addr %s122, 8
        %s124 = scalar_lea.vmem [#allocation2], %s123
        %p125 = pneg %p39
        %p126 = pneg %p36
        %p127 = pneg %p65
        %p128 = pneg %p62
        %s129 = sand.u32 %s52, 1
        %s130 = scalar_lea.sflag [#allocation4], %s129
        %s131 = sand.u32 %s52, 1
        %s132 = smul.addr %s131, 8
        %s133 = scalar_lea.vmem [#allocation5], %s132
        %v134 = vld [vmem:[%s114] sm:$0xff]
        %v135 = vmul.f32 %v134, %v134
        %136 = vadd.xlane.f32.xlu0 %v135
        %v137 = vpop.xlane.xlu0 %136
        %v138 = vmax.f32 %v137, 1e-24
        %v139 = vrsqrt.pop %v138
        %v140 = vmul.f32 %v139, %v138
        %v141 = vmul.f32 %v140, %v139
        %v142 = vmul.f32 0.5, %v141
        %v143 = vsub.f32 1.5, %v142
        %v144 = vmul.f32 %v139, %v143
        %vm145 = vweird.f32 %v138
        %vm146 = vweird.f32 %v139
        %vm147 = vmor %vm145, %vm146
        %v148 = vsel %vm147, %v139, %v144
        %v149 = vmul.f32 %v134, %v148
        %150 = vst [vmem:[%s133] sm:$0xff] %v149
        %s151 = sand.u32 %s52, 1
        %s152 = scalar_lea.sflag [#allocation4], %s151
        %s153 = sand.u32 %s52, 1
        %s154 = smul.addr %s153, 8
        %s155 = scalar_lea.vmem [#allocation5], %s154
        // Predicated region
        $region29: #{tpu_custom_call.1} parent=23 // pred_check
          %p156 = pneg %p62
        $region30: #{tpu_custom_call.1} parent=23 // pred_check_branch
          %158 = sbr.rel (%p156) target = $region32
        $region31: #{tpu_custom_call.1} parent=23 // pred_region
          %160 = vsyncadd %s152, 0
          %s161 = smul.addr %s18, 8
          %s162 = scalar_lea.hbm %s1, %s161
          %s164 = sshll.u32 %s155, 4
          %s165 = int_to_ptr.vmem [resolvable:$true] %s164
          %s166 = sshll.u32 %s162, 4
          %s167 = int_to_ptr.hbm [resolvable:$true] %s166
          %169 = dma.vmem_to_hbm [thread:$0]  %s165, 128, %s167, %s152
        $region32: #{tpu_custom_call.1} parent=23 // pred_fallthru
          _
      $region24: #{tpu_custom_call.1} parent=5 // pred_fallthru
        _
      %p170 = scmp.le.s32.totalorder 2, %s13
      // Predicated region
      $region33: #{tpu_custom_call.1} parent=5 // pred_check
        %p171 = pneg %p170
      $region34: #{tpu_custom_call.1} parent=5 // pred_check_branch
        %173 = sbr.rel (%p171) target = $region36
      $region35: #{tpu_custom_call.1} parent=5 // pred_region
        %s174 = ssub.s32 %s13, 2
        // Predicated region
        $region37: #{tpu_custom_call.1} parent=35 // pred_check
          %p175 = pneg %p68
        $region38: #{tpu_custom_call.1} parent=35 // pred_check_branch
          %177 = sbr.rel (%p175) target = $region40
        $region39: #{tpu_custom_call.1} parent=35 // pred_region
          %s178 = sand.u32 %s53, 1
          %s179 = scalar_lea.sflag [#allocation4], %s178
          %s180 = sand.u32 %s53, 1
          %s181 = smul.addr %s180, 8
          %s182 = scalar_lea.vmem [#allocation5], %s181
          %184 = dma.done %s179, 128
        $region40: #{tpu_custom_call.1} parent=35 // pred_fallthru
          _
      $region36: #{tpu_custom_call.1} parent=5 // pred_fallthru
        _
    $region6: #{tpu_custom_call.1} parent=1 // loop_footer
      %s17 = sadd.s32 1, %s13
    $region7: #{tpu_custom_call.1} parent=1 // loop_footer_branch
      %12 = sbr.rel target = $region3
    $region8: #{tpu_custom_call.1} parent=1 // loop_exit
      _
    %185 = vsyncpa [#allocation3], 1
    %s186 = scalar_lea.sflag [#allocation3], 1
    %187 = vsyncpa %s186, 1
    %188 = vsyncpa [#allocation4], 1
    %s189 = scalar_lea.sflag [#allocation4], 1
    %190 = vsyncpa %s189, 1

</llo_original>
